<compile_context>
chip_gen: v5e
topology: v5e:2x2
jax: 0.10.0
libtpu: 0.0.40
codegen_flags: <defaults>
</compile_context>

<pallas_src>
import functools

import jax
import jax.numpy as jnp
from jax.experimental import pallas as pl
from jax.experimental.pallas import tpu as pltpu

_LANE = 128
_VMEM_SPEC = pl.BlockSpec(memory_space=pltpu.MemorySpace.VMEM)
_MXU_DTYPE = jnp.bfloat16


def _round_up(x, m):
    return (x + m - 1) // m * m


def _pad2d(x, rows, cols):
    r, c = x.shape
    return jnp.pad(x, ((0, rows - r), (0, cols - c)))


def _vmem_limit_bytes(frac=0.75, default_cap=128 * 1024 * 1024):
    """Generation-aware scoped-VMEM limit: ~75% of physical per-core VMEM."""
    cap = default_cap
    try:
        info = pltpu.get_tpu_info()
        cap = int(getattr(info, "vmem_capacity_bytes", default_cap))
    except Exception:
        pass
    return int(cap * frac)


# ------------------------------ fused Pallas kernel ---------------------------

def _gcn_net_kernel(a_ref, x_ref, w_in_ref, b_in_ref, w_gcn_ref, w_out_ref,
                    b_out_ref, o_ref, *, num_layers):
    """Entire GCNNet forward on lane-padded bf16 slabs; h stays on-chip throughout."""
    # MLP-in: h = relu(X @ W_in + b_in)   (bf16 MXU matmul, f32 accumulate, VPU epilogue)
    h = jnp.dot(x_ref[...], w_in_ref[...], preferred_element_type=jnp.float32)
    h = jnp.maximum(h + b_in_ref[...], 0.0)

    # GCN layers: h = relu(A_norm @ (h @ W_l)).  Small fixed L -> unrolled; both matmuls
    # hit the MXU with bf16 inputs / f32 accumulation; h and t stay resident in VMEM/vregs.
    a = a_ref[...]                                   # bf16 [N_p, N_p], loaded once
    for l in range(num_layers):
        t = jnp.dot(h.astype(_MXU_DTYPE), w_gcn_ref[l],
                    preferred_element_type=jnp.float32)
        h = jnp.maximum(
            jnp.dot(a, t.astype(_MXU_DTYPE), preferred_element_type=jnp.float32), 0.0)

    # MLP-out (no activation)
    out = jnp.dot(h.astype(_MXU_DTYPE), w_out_ref[...],
                  preferred_element_type=jnp.float32)
    o_ref[...] = (out + b_out_ref[...]).astype(o_ref.dtype)


# ------------------------------- GCNNet wrapper -------------------------------

def init_gcn_net_params(key, num_feats, num_classes, num_hidden, num_layers):
    """Glorot-uniform-ish init matching the module's parameter shapes."""
    keys = jax.random.split(key, num_layers + 4)

    def glorot(k, fan_in, fan_out):
        lim = jnp.sqrt(6.0 / (fan_in + fan_out))
        return jax.random.uniform(k, (fan_in, fan_out), jnp.float32, -lim, lim)

    return {
        "w_in": glorot(keys[0], num_feats, num_hidden),
        "b_in": 0.1 * jax.random.normal(keys[1], (1, num_hidden), jnp.float32),
        # stacked [L, H, H] so the fused kernel takes a single ref
        "w_gcn": jnp.stack(
            [glorot(keys[2 + i], num_hidden, num_hidden) for i in range(num_layers)]),
        "w_out": glorot(keys[-2], num_hidden, num_classes),
        "b_out": 0.1 * jax.random.normal(keys[-1], (1, num_classes), jnp.float32),
    }


def prepare_graph(a_norm):
    """Pad the dense normalized adjacency to 128 lanes and cast to bf16.

    Hoisted out of gcn_net_forward: done ONCE per (static) graph so the largest
    tensor is not re-padded / re-copied in HBM on every forward call.
    """
    n = a_norm.shape[0]
    n_p = _round_up(n, _LANE)
    return _pad2d(a_norm, n_p, n_p).astype(_MXU_DTYPE)


def gcn_net_forward(params, a_pad, features):
    """Fused GCNNet forward.  `a_pad` must come from prepare_graph(a_norm)."""
    n, f = features.shape
    h_dim = params["w_in"].shape[1]
    c = params["w_out"].shape[1]
    num_layers = int(params["w_gcn"].shape[0])

    n_p = _round_up(n, _LANE)
    f_p = _round_up(f, _LANE)
    h_p = _round_up(h_dim, _LANE)
    c_p = _round_up(c, _LANE)
    assert a_pad.shape == (n_p, n_p) and a_pad.dtype == _MXU_DTYPE, \
        "pass prepare_graph(a_norm), not the raw adjacency"

    # Lane-dense padding + bf16 cast of the per-call tensors (all small vs A).
    # Padded rows of h after MLP-in equal relu(b_in) (not zero for nonzero bias); the
    # result is still exact because A's padded columns are zero and the final [:n, :c]
    # slice drops padded rows — this relies on no row-wise statistics (batch/pair norm).
    x_pad = _pad2d(features, n_p, f_p).astype(_MXU_DTYPE)
    w_in = _pad2d(params["w_in"], f_p, h_p).astype(_MXU_DTYPE)
    b_in = _pad2d(params["b_in"], 1, h_p)                      # f32
    w_gcn = jnp.pad(params["w_gcn"],
                    ((0, 0), (0, h_p - h_dim), (0, h_p - h_dim))).astype(_MXU_DTYPE)
    w_out = _pad2d(params["w_out"], h_p, c_p).astype(_MXU_DTYPE)
    b_out = _pad2d(params["b_out"], 1, c_p)                    # f32

    flops = (2 * n_p * f_p * h_p
             + num_layers * (2 * n_p * h_p * h_p + 2 * n_p * n_p * h_p)
             + 2 * n_p * h_p * c_p)
    bytes_accessed = (2 * (n_p * n_p + n_p * f_p + f_p * h_p
                           + num_layers * h_p * h_p + h_p * c_p)   # bf16 inputs
                      + 4 * (h_p + c_p + n_p * c_p))               # f32 biases + output

    out_pad = pl.pallas_call(
        functools.partial(_gcn_net_kernel, num_layers=num_layers),
        out_shape=jax.ShapeDtypeStruct((n_p, c_p), jnp.float32),
        in_specs=[_VMEM_SPEC] * 7,
        out_specs=_VMEM_SPEC,
        compiler_params=pltpu.CompilerParams(vmem_limit_bytes=_vmem_limit_bytes()),
        cost_estimate=pl.CostEstimate(
            flops=flops, transcendentals=0, bytes_accessed=bytes_accessed),
    )(a_pad, x_pad, w_in, b_in, w_gcn, w_out, b_out)

    return out_pad[:n, :c]


def gcn_net_forward_ref(params, a_norm, features, mxu_dtype=None):
    """Pure-JAX reference.  mxu_dtype=bf16 mirrors the kernel's matmul numerics."""
    def dot(a, b):
        if mxu_dtype is not None:
            a = a.astype(mxu_dtype)
            b = b.astype(mxu_dtype)
        return jnp.dot(a, b, preferred_element_type=jnp.float32)

    h = jnp.maximum(dot(features, params["w_in"]) + params["b_in"], 0.0)
    for l in range(params["w_gcn"].shape[0]):
        h = jnp.maximum(dot(a_norm, dot(h, params["w_gcn"][l])), 0.0)
    return dot(h, params["w_out"]) + params["b_out"]


def build_normalized_adjacency(key, num_nodes, edge_prob=0.2):
    """Random undirected graph -> dense D^-1/2 (A + I) D^-1/2 (plain-JAX glue)."""
    m = jax.random.bernoulli(key, edge_prob, (num_nodes, num_nodes)).astype(jnp.float32)
    a = jnp.maximum(m, m.T)                                   # symmetrize
    a = a * (1.0 - jnp.eye(num_nodes)) + jnp.eye(num_nodes)   # add self-loops
    d_inv_sqrt = 1.0 / jnp.sqrt(jnp.sum(a, axis=1))
    return a * d_inv_sqrt[:, None] * d_inv_sqrt[None, :]


# ----------------------------------- main -------------------------------------

if __name__ == "__main__":
    NUM_NODES = 32
    NUM_FEATS = 16
    NUM_HIDDEN = 32
    NUM_CLASSES = 8
    NUM_LAYERS = 2

    root = jax.random.PRNGKey(0)
    k_graph, k_feat, k_param = jax.random.split(root, 3)

    a_norm = build_normalized_adjacency(k_graph, NUM_NODES)
    features = jax.random.normal(k_feat, (NUM_NODES, NUM_FEATS), jnp.float32)
    params = init_gcn_net_params(k_param, NUM_FEATS, NUM_CLASSES, NUM_HIDDEN, NUM_LAYERS)

    # Graph prep (pad + bf16 cast of A) is done once, outside the forward.
    a_pad = prepare_graph(a_norm)

    out = gcn_net_forward(params, a_pad, features)
    out = jax.block_until_ready(out)

    assert out.shape == (NUM_NODES, NUM_CLASSES), out.shape
    assert out.dtype == jnp.float32
    assert bool(jnp.all(jnp.isfinite(out)))

    # Primary check: reference with the same bf16-in / f32-accumulate numerics.
    ref_bf16 = gcn_net_forward_ref(params, a_norm, features, mxu_dtype=_MXU_DTYPE)
    assert bool(jnp.allclose(out, ref_bf16, rtol=1e-2, atol=1e-2)), \
        "mismatch vs bf16-numerics JAX reference"

    # Sanity check vs exact f32 math (loose tolerance for bf16 input quantization).
    ref_f32 = gcn_net_forward_ref(params, a_norm, features, mxu_dtype=None)
    assert bool(jnp.allclose(out, ref_f32, rtol=1e-1, atol=1e-1)), \
        "mismatch vs f32 JAX reference"

    print("KERNEL_OK")
</pallas_src>

<mosaic_0001>
module attributes {stable_mosaic.version = 11 : i64} {
  func.func @_gcn_net_kernel(%arg0: memref<128x128xbf16, #tpu.memory_space<vmem>>, %arg1: memref<128x128xbf16, #tpu.memory_space<vmem>>, %arg2: memref<128x128xbf16, #tpu.memory_space<vmem>>, %arg3: memref<1x128xf32, #tpu.memory_space<vmem>>, %arg4: memref<2x128x128xbf16, #tpu.memory_space<vmem>>, %arg5: memref<128x128xbf16, #tpu.memory_space<vmem>>, %arg6: memref<1x128xf32, #tpu.memory_space<vmem>>, %arg7: memref<128x128xf32, #tpu.memory_space<vmem>>) attributes {dimension_semantics = [], scalar_prefetch = 0 : i64, scratch_operands = 0 : i64, tpu.core_type = #tpu.core_type<tc>} {
    %c0 = arith.constant 0 : index
    %c0_0 = arith.constant 0 : index
    %0 = vector.load %arg1[%c0, %c0_0] : memref<128x128xbf16, #tpu.memory_space<vmem>>, vector<128x128xbf16>
    %c0_1 = arith.constant 0 : index
    %c0_2 = arith.constant 0 : index
    %1 = vector.load %arg2[%c0_1, %c0_2] : memref<128x128xbf16, #tpu.memory_space<vmem>>, vector<128x128xbf16>
    %cst = arith.constant dense<0.000000e+00> : vector<128x128xf32>
    %2 = tpu.matmul %0, %1, %cst {dimension_numbers = #tpu.dot_dimension_numbers<[1], [0], [0], [1], [0, 0, 1, 1], [], []>} : vector<128x128xbf16>, vector<128x128xbf16>, vector<128x128xf32> -> vector<128x128xf32>
    %c0_3 = arith.constant 0 : index
    %c0_4 = arith.constant 0 : index
    %3 = vector.load %arg3[%c0_3, %c0_4] : memref<1x128xf32, #tpu.memory_space<vmem>>, vector<1x128xf32>
    %4 = vector.broadcast %3 : vector<1x128xf32> to vector<128x128xf32>
    %5 = arith.addf %2, %4 : vector<128x128xf32>
    %cst_5 = arith.constant 0.000000e+00 : f32
    %6 = vector.broadcast %cst_5 : f32 to vector<128x128xf32>
    %7 = arith.maximumf %5, %6 : vector<128x128xf32>
    %c0_6 = arith.constant 0 : index
    %c0_7 = arith.constant 0 : index
    %8 = vector.load %arg0[%c0_6, %c0_7] : memref<128x128xbf16, #tpu.memory_space<vmem>>, vector<128x128xbf16>
    %9 = arith.truncf %7 : vector<128x128xf32> to vector<128x128xbf16>
    %c0_8 = arith.constant 0 : index
    %c0_9 = arith.constant 0 : index
    %c0_10 = arith.constant 0 : index
    %10 = vector.load %arg4[%c0_8, %c0_9, %c0_10] : memref<2x128x128xbf16, #tpu.memory_space<vmem>>, vector<1x128x128xbf16>
    %11 = vector.shape_cast %10 : vector<1x128x128xbf16> to vector<128x128xbf16>
    %cst_11 = arith.constant dense<0.000000e+00> : vector<128x128xf32>
    %12 = tpu.matmul %9, %11, %cst_11 {dimension_numbers = #tpu.dot_dimension_numbers<[1], [0], [0], [1], [0, 0, 1, 1], [], []>} : vector<128x128xbf16>, vector<128x128xbf16>, vector<128x128xf32> -> vector<128x128xf32>
    %13 = arith.truncf %12 : vector<128x128xf32> to vector<128x128xbf16>
    %cst_12 = arith.constant dense<0.000000e+00> : vector<128x128xf32>
    %14 = tpu.matmul %8, %13, %cst_12 {dimension_numbers = #tpu.dot_dimension_numbers<[1], [0], [0], [1], [0, 0, 1, 1], [], []>} : vector<128x128xbf16>, vector<128x128xbf16>, vector<128x128xf32> -> vector<128x128xf32>
    %cst_13 = arith.constant 0.000000e+00 : f32
    %15 = vector.broadcast %cst_13 : f32 to vector<128x128xf32>
    %16 = arith.maximumf %14, %15 : vector<128x128xf32>
    %17 = arith.truncf %16 : vector<128x128xf32> to vector<128x128xbf16>
    %c1 = arith.constant 1 : index
    %c0_14 = arith.constant 0 : index
    %c0_15 = arith.constant 0 : index
    %18 = vector.load %arg4[%c1, %c0_14, %c0_15] : memref<2x128x128xbf16, #tpu.memory_space<vmem>>, vector<1x128x128xbf16>
    %19 = vector.shape_cast %18 : vector<1x128x128xbf16> to vector<128x128xbf16>
    %cst_16 = arith.constant dense<0.000000e+00> : vector<128x128xf32>
    %20 = tpu.matmul %17, %19, %cst_16 {dimension_numbers = #tpu.dot_dimension_numbers<[1], [0], [0], [1], [0, 0, 1, 1], [], []>} : vector<128x128xbf16>, vector<128x128xbf16>, vector<128x128xf32> -> vector<128x128xf32>
    %21 = arith.truncf %20 : vector<128x128xf32> to vector<128x128xbf16>
    %cst_17 = arith.constant dense<0.000000e+00> : vector<128x128xf32>
    %22 = tpu.matmul %8, %21, %cst_17 {dimension_numbers = #tpu.dot_dimension_numbers<[1], [0], [0], [1], [0, 0, 1, 1], [], []>} : vector<128x128xbf16>, vector<128x128xbf16>, vector<128x128xf32> -> vector<128x128xf32>
    %cst_18 = arith.constant 0.000000e+00 : f32
    %23 = vector.broadcast %cst_18 : f32 to vector<128x128xf32>
    %24 = arith.maximumf %22, %23 : vector<128x128xf32>
    %25 = arith.truncf %24 : vector<128x128xf32> to vector<128x128xbf16>
    %c0_19 = arith.constant 0 : index
    %c0_20 = arith.constant 0 : index
    %26 = vector.load %arg5[%c0_19, %c0_20] : memref<128x128xbf16, #tpu.memory_space<vmem>>, vector<128x128xbf16>
    %cst_21 = arith.constant dense<0.000000e+00> : vector<128x128xf32>
    %27 = tpu.matmul %25, %26, %cst_21 {dimension_numbers = #tpu.dot_dimension_numbers<[1], [0], [0], [1], [0, 0, 1, 1], [], []>} : vector<128x128xbf16>, vector<128x128xbf16>, vector<128x128xf32> -> vector<128x128xf32>
    %c0_22 = arith.constant 0 : index
    %c0_23 = arith.constant 0 : index
    %28 = vector.load %arg6[%c0_22, %c0_23] : memref<1x128xf32, #tpu.memory_space<vmem>>, vector<1x128xf32>
    %29 = vector.broadcast %28 : vector<1x128xf32> to vector<128x128xf32>
    %30 = arith.addf %27, %29 : vector<128x128xf32>
    %c0_24 = arith.constant 0 : index
    %c0_25 = arith.constant 0 : index
    %31 = vector.load %arg7[%c0_24, %c0_25] : memref<128x128xf32, #tpu.memory_space<vmem>>, vector<128x128xf32>
    tpu.vector_store %arg7[%c0_24, %c0_25], %30 {strides = array<i32>} : memref<128x128xf32, #tpu.memory_space<vmem>>, vector<128x128xf32>,
    return
  }
}

</mosaic_0001>

<llo_original>
// kernel: tpu_custom_call.1
$region0: #{tpu_custom_call.1}
  #allocation0 [shape = 'u32[]', space=smem, size = 0x4, offset = 0x4, fixed_abs, tag = 'smem constant byte address 0x4 - core index']
  #allocation1 [shape = 'u32[72,128]{1,0:T(1,128)}', space=vmem, size = 0x9000, scoped, tag = 'internal scratch']
  %s0 = inlined_call_operand.hbm [shape: bf16[128,128], index: 0, kind: input, shape index: {}]
  %s1 = inlined_call_operand.hbm [shape: bf16[128,128], index: 1, kind: input, shape index: {}]
  %s2 = inlined_call_operand.hbm [shape: bf16[128,128], index: 2, kind: input, shape index: {}]
  %s3 = inlined_call_operand.vmem [shape: f32[1,128], index: 3, kind: input, shape index: {}]
  %s4 = inlined_call_operand.hbm [shape: bf16[2,128,128], index: 4, kind: input, shape index: {}]
  %s5 = inlined_call_operand.hbm [shape: bf16[128,128], index: 5, kind: input, shape index: {}]
  %s6 = inlined_call_operand.vmem [shape: f32[1,128], index: 6, kind: input, shape index: {}]
  %s7 = inlined_call_operand.hbm [shape: f32[128,128], index: 7, kind: output, shape index: {}]
  %s8 = sld [smem:[#allocation0]]
  $region58: #{tpu_custom_call.1} parent=0
    _
  %s10 = ssub.s32 1, %s8
  %s11 = scalar_select 0, %s10, %s8
  $region1: #{tpu_custom_call.1} parent=0
    #allocation2 [shape = 'u8[32768]{0}', space=vmem, size = 0x8000, scoped, tag = 'input window, operand 0, single buffered']
    #allocation3 [shape = 's32[1]{0}', space=sflag, size = 0x4, scoped, tag = 'scoped memory for tpu_custom_call.1']
    #allocation4 [shape = 's32[1]{0}', space=sflag, size = 0x4, scoped, tag = 'scoped memory for tpu_custom_call.1']
    #allocation5 [shape = 'u8[32768]{0}', space=vmem, size = 0x8000, scoped, tag = 'input window, operand 1, single buffered']
    #allocation6 [shape = 's32[1]{0}', space=sflag, size = 0x4, scoped, tag = 'scoped memory for tpu_custom_call.1']
    #allocation7 [shape = 'u8[32768]{0}', space=vmem, size = 0x8000, scoped, tag = 'input window, operand 2, single buffered']
    #allocation8 [shape = 'u8[65536]{0}', space=vmem, size = 0x10000, scoped, tag = 'input window, operand 4, single buffered']
    #allocation9 [shape = 's32[1]{0}', space=sflag, size = 0x4, scoped, tag = 'scoped memory for tpu_custom_call.1']
    #allocation10 [shape = 'u8[32768]{0}', space=vmem, size = 0x8000, scoped, tag = 'input window, operand 5, single buffered']
    #allocation11 [shape = 'u8[65536]{0}', space=vmem, size = 0x10000, scoped, tag = 'output window, operand 0, single buffered']
    %12 = vsyncpa [#allocation3], 0
    %13 = vsyncpa [#allocation6], 0
    %14 = vsyncpa [#allocation9], 0
    %15 = vsyncpa [#allocation4], 0
    // Predicated region
    $region2: #{tpu_custom_call.1} parent=1 // pred_check
      _
    $region3: #{tpu_custom_call.1} parent=1 // pred_check_branch
      %17 = sbr.rel (0) target = $region5
    $region4: #{tpu_custom_call.1} parent=1 // pred_region
      %19 = vsyncadd [#allocation3], 0
      %s20 = sshll.u32 %s0, 4
      %s21 = int_to_ptr.hbm [resolvable:$true] %s20
      %s22 = sshll.u32 [#allocation2], 4
      %s23 = int_to_ptr.vmem [resolvable:$true] %s22
      %28 = dma.hbm_to_vmem [thread:$0]  %s21, 1024, %s23, [#allocation3], 64, 64, 4
    $region5: #{tpu_custom_call.1} parent=1 // pred_fallthru
      _
    // Predicated region
    $region6: #{tpu_custom_call.1} parent=1 // pred_check
      _
    $region7: #{tpu_custom_call.1} parent=1 // pred_check_branch
      %30 = sbr.rel (0) target = $region9
    $region8: #{tpu_custom_call.1} parent=1 // pred_region
      %32 = vsyncadd [#allocation6], 0
      %s33 = sshll.u32 %s1, 4
      %s34 = int_to_ptr.hbm [resolvable:$true] %s33
      %s35 = sshll.u32 [#allocation5], 4
      %s36 = int_to_ptr.vmem [resolvable:$true] %s35
      %41 = dma.hbm_to_vmem [thread:$0]  %s34, 1024, %s36, [#allocation6], 64, 64, 4
    $region9: #{tpu_custom_call.1} parent=1 // pred_fallthru
      _
    // Predicated region
    $region10: #{tpu_custom_call.1} parent=1 // pred_check
      _
    $region11: #{tpu_custom_call.1} parent=1 // pred_check_branch
      %43 = sbr.rel (0) target = $region13
    $region12: #{tpu_custom_call.1} parent=1 // pred_region
      %45 = vsyncadd [#allocation6], 0
      %s46 = sshll.u32 %s2, 4
      %s47 = int_to_ptr.hbm [resolvable:$true] %s46
      %s48 = sshll.u32 [#allocation7], 4
      %s49 = int_to_ptr.vmem [resolvable:$true] %s48
      %54 = dma.hbm_to_vmem [thread:$0]  %s47, 1024, %s49, [#allocation6], 64, 64, 4
    $region13: #{tpu_custom_call.1} parent=1 // pred_fallthru
      _
    // Predicated region
    $region14: #{tpu_custom_call.1} parent=1 // pred_check
      _
    $region15: #{tpu_custom_call.1} parent=1 // pred_check_branch
      %56 = sbr.rel (0) target = $region17
    $region16: #{tpu_custom_call.1} parent=1 // pred_region
      _
    $region17: #{tpu_custom_call.1} parent=1 // pred_fallthru
      _
    // Predicated region
    $region18: #{tpu_custom_call.1} parent=1 // pred_check
      _
    $region19: #{tpu_custom_call.1} parent=1 // pred_check_branch
      %58 = sbr.rel (0) target = $region21
    $region20: #{tpu_custom_call.1} parent=1 // pred_region
      %60 = vsyncadd [#allocation9], 0
      %s61 = sshll.u32 %s4, 4
      %s62 = int_to_ptr.hbm [resolvable:$true] %s61
      %s63 = sshll.u32 [#allocation8], 4
      %s64 = int_to_ptr.vmem [resolvable:$true] %s63
      %69 = dma.hbm_to_vmem [thread:$0]  %s62, 2048, %s64, [#allocation9], 64, 64, 4
    $region21: #{tpu_custom_call.1} parent=1 // pred_fallthru
      _
    // Predicated region
    $region22: #{tpu_custom_call.1} parent=1 // pred_check
      _
    $region23: #{tpu_custom_call.1} parent=1 // pred_check_branch
      %71 = sbr.rel (0) target = $region25
    $region24: #{tpu_custom_call.1} parent=1 // pred_region
      %73 = vsyncadd [#allocation9], 0
      %s74 = sshll.u32 %s5, 4
      %s75 = int_to_ptr.hbm [resolvable:$true] %s74
      %s76 = sshll.u32 [#allocation10], 4
      %s77 = int_to_ptr.vmem [resolvable:$true] %s76
      %82 = dma.hbm_to_vmem [thread:$0]  %s75, 1024, %s77, [#allocation9], 64, 64, 4
    $region25: #{tpu_custom_call.1} parent=1 // pred_fallthru
      _
    // Predicated region
    $region26: #{tpu_custom_call.1} parent=1 // pred_check
      _
    $region27: #{tpu_custom_call.1} parent=1 // pred_check_branch
      %84 = sbr.rel (0) target = $region29
    $region28: #{tpu_custom_call.1} parent=1 // pred_region
      _
    $region29: #{tpu_custom_call.1} parent=1 // pred_fallthru
      _
    // Predicated region
    $region30: #{tpu_custom_call.1} parent=1 // pred_check
      _
    $region31: #{tpu_custom_call.1} parent=1 // pred_check_branch
      %86 = sbr.rel (0) target = $region33
    $region32: #{tpu_custom_call.1} parent=1 // pred_region
      %88 = dma.done [#allocation3], 1024
    $region33: #{tpu_custom_call.1} parent=1 // pred_fallthru
      _
    // Predicated region
    $region34: #{tpu_custom_call.1} parent=1 // pred_check
      _
    $region35: #{tpu_custom_call.1} parent=1 // pred_check_branch
      %90 = sbr.rel (0) target = $region37
    $region36: #{tpu_custom_call.1} parent=1 // pred_region
      %92 = dma.done [#allocation6], 1024
    $region37: #{tpu_custom_call.1} parent=1 // pred_fallthru
      _
    // Predicated region
    $region38: #{tpu_custom_call.1} parent=1 // pred_check
      _
    $region39: #{tpu_custom_call.1} parent=1 // pred_check_branch
      %94 = sbr.rel (0) target = $region41
    $region40: #{tpu_custom_call.1} parent=1 // pred_region
      %96 = dma.done [#allocation6], 1024
    $region41: #{tpu_custom_call.1} parent=1 // pred_fallthru
      _
    // Predicated region
    $region42: #{tpu_custom_call.1} parent=1 // pred_check
      _
    $region43: #{tpu_custom_call.1} parent=1 // pred_check_branch
      %98 = sbr.rel (0) target = $region45
    $region44: #{tpu_custom_call.1} parent=1 // pred_region
      %100 = dma.done [#allocation9], 2048
    $region45: #{tpu_custom_call.1} parent=1 // pred_fallthru
      _
    // Predicated region
    $region46: #{tpu_custom_call.1} parent=1 // pred_check
      _
    $region47: #{tpu_custom_call.1} parent=1 // pred_check_branch
      %102 = sbr.rel (0) target = $region49
    $region48: #{tpu_custom_call.1} parent=1 // pred_region
      %104 = dma.done [#allocation9], 1024
    $region49: #{tpu_custom_call.1} parent=1 // pred_fallthru
      _
    %v105 = vld [vmem:[#allocation5] sm:$0xf]
    %v106 = vld [vmem:[#allocation5 + $0x4] sm:$0xf]
    %v107 = vld [vmem:[#allocation5 + $0x8] sm:$0xf]
    %v108 = vld [vmem:[#allocation5 + $0xc] sm:$0xf]
    %v109 = vld [vmem:[#allocation5 + $0x10] sm:$0xf]
    %v110 = vld [vmem:[#allocation5 + $0x14] sm:$0xf]
    %v111 = vld [vmem:[#allocation5 + $0x18] sm:$0xf]
    %v112 = vld [vmem:[#allocation5 + $0x1c] sm:$0xf]
    %v113 = vld [vmem:[#allocation5 + $0x20] sm:$0xf]
    %v114 = vld [vmem:[#allocation5 + $0x24] sm:$0xf]
    %v115 = vld [vmem:[#allocation5 + $0x28] sm:$0xf]
    %v116 = vld [vmem:[#allocation5 + $0x2c] sm:$0xf]
    %v117 = vld [vmem:[#allocation5 + $0x30] sm:$0xf]
    %v118 = vld [vmem:[#allocation5 + $0x34] sm:$0xf]
    %v119 = vld [vmem:[#allocation5 + $0x38] sm:$0xf]
    %v120 = vld [vmem:[#allocation5 + $0x3c] sm:$0xf]
    %v121 = vld [vmem:[#allocation7] sm:$0xf]
    %v122 = vld [vmem:[#allocation7 + $0x4] sm:$0xf]
    %v123 = vld [vmem:[#allocation7 + $0x8] sm:$0xf]
    %v124 = vld [vmem:[#allocation7 + $0xc] sm:$0xf]
    %v125 = vld [vmem:[#allocation7 + $0x10] sm:$0xf]
    %v126 = vld [vmem:[#allocation7 + $0x14] sm:$0xf]
    %v127 = vld [vmem:[#allocation7 + $0x18] sm:$0xf]
    %v128 = vld [vmem:[#allocation7 + $0x1c] sm:$0xf]
    %v129 = vld [vmem:[#allocation7 + $0x20] sm:$0xf]
    %v130 = vld [vmem:[#allocation7 + $0x24] sm:$0xf]
    %v131 = vld [vmem:[#allocation7 + $0x28] sm:$0xf]
    %v132 = vld [vmem:[#allocation7 + $0x2c] sm:$0xf]
    %v133 = vld [vmem:[#allocation7 + $0x30] sm:$0xf]
    %v134 = vld [vmem:[#allocation7 + $0x34] sm:$0xf]
    %v135 = vld [vmem:[#allocation7 + $0x38] sm:$0xf]
    %v136 = vld [vmem:[#allocation7 + $0x3c] sm:$0xf]
    %v137 = vld [vmem:[%s3] sm:$0x1]
    %v139 = vperm.slane %v137, 0
    %v157 = vunpack.c.l.b16 %v105
    %v158 = vunpack.c.l.b16 %v106
    %v159 = vunpack.c.l.b16 %v107
    %v160 = vunpack.c.l.b16 %v108
    %v161 = vunpack.c.l.b16 %v109
    %v162 = vunpack.c.l.b16 %v110
    %v163 = vunpack.c.l.b16 %v111
    %v164 = vunpack.c.l.b16 %v112
    %v165 = vunpack.c.l.b16 %v113
    %v166 = vunpack.c.l.b16 %v114
    %v167 = vunpack.c.l.b16 %v115
    %v168 = vunpack.c.l.b16 %v116
    %v169 = vunpack.c.l.b16 %v117
    %v170 = vunpack.c.l.b16 %v118
    %v171 = vunpack.c.l.b16 %v119
    %v172 = vunpack.c.l.b16 %v120
    %v173 = vpack.c.b16 %v158, %v157
    %v174 = vpack.c.b16 %v160, %v159
    %v175 = vpack.c.b16 %v162, %v161
    %v176 = vpack.c.b16 %v164, %v163
    %v177 = vpack.c.b16 %v166, %v165
    %v178 = vpack.c.b16 %v168, %v167
    %v179 = vpack.c.b16 %v170, %v169
    %v180 = vpack.c.b16 %v172, %v171
    %v205 = vunpack.c.l.b16 %v121
    %v206 = vunpack.c.l.b16 %v122
    %v207 = vunpack.c.l.b16 %v123
    %v208 = vunpack.c.l.b16 %v124
    %v209 = vunpack.c.l.b16 %v125
    %v210 = vunpack.c.l.b16 %v126
    %v211 = vunpack.c.l.b16 %v127
    %v212 = vunpack.c.l.b16 %v128
    %v213 = vunpack.c.l.b16 %v129
    %v214 = vunpack.c.l.b16 %v130
    %v215 = vunpack.c.l.b16 %v131
    %v216 = vunpack.c.l.b16 %v132
    %v217 = vunpack.c.l.b16 %v133
    %v218 = vunpack.c.l.b16 %v134
    %v219 = vunpack.c.l.b16 %v135
    %v220 = vunpack.c.l.b16 %v136
    %v221 = vpack.c.b16 %v206, %v205
    %v222 = vpack.c.b16 %v208, %v207
    %v223 = vpack.c.b16 %v210, %v209
    %v224 = vpack.c.b16 %v212, %v211
    %v225 = vpack.c.b16 %v214, %v213
    %v226 = vpack.c.b16 %v216, %v215
    %v227 = vpack.c.b16 %v218, %v217
    %v228 = vpack.c.b16 %v220, %v219
    %237 = vmatpush.bf16.msra.mxu0 %v228
    %238 = vmatpush.bf16.msra.mxu0 %v227
    %239 = vmatpush.bf16.msra.mxu0 %v226
    %240 = vmatpush.bf16.msra.mxu0 %v225
    %241 = vmatpush.bf16.msra.mxu0 %v224
    %242 = vmatpush.bf16.msra.mxu0 %v223
    %243 = vmatpush.bf16.msra.mxu0 %v222
    %244 = vmatpush.bf16.msra.mxu0 %v221
    %245 = vmatmul.bf16.gmra.mxu0 %v173
    %v246 = vpop.f32.mrf.mxu0
    %v247 = vadd.f32 %v139, %v246
    %v248 = vpop.f32.mrf.mxu0
    %v249 = vadd.f32 %v139, %v248
    %250 = vmatmul.bf16.gmra.mxu0 %v174
    %v251 = vpop.f32.mrf.mxu0
    %v252 = vadd.f32 %v139, %v251
    %v253 = vpop.f32.mrf.mxu0
    %v254 = vadd.f32 %v139, %v253
    %255 = vmatmul.bf16.gmra.mxu0 %v175
    %v256 = vpop.f32.mrf.mxu0
    %v257 = vadd.f32 %v139, %v256
    %v258 = vpop.f32.mrf.mxu0
    %v259 = vadd.f32 %v139, %v258
    %260 = vmatmul.bf16.gmra.mxu0 %v176
    %v261 = vpop.f32.mrf.mxu0
    %v262 = vadd.f32 %v139, %v261
    %v263 = vpop.f32.mrf.mxu0
    %v264 = vadd.f32 %v139, %v263
    %265 = vmatmul.bf16.gmra.mxu0 %v177
    %v266 = vpop.f32.mrf.mxu0
    %v267 = vadd.f32 %v139, %v266
    %v268 = vpop.f32.mrf.mxu0
    %v269 = vadd.f32 %v139, %v268
    %270 = vmatmul.bf16.gmra.mxu0 %v178
    %v271 = vpop.f32.mrf.mxu0
    %v272 = vadd.f32 %v139, %v271
    %v273 = vpop.f32.mrf.mxu0
    %v274 = vadd.f32 %v139, %v273
    %275 = vmatmul.bf16.gmra.mxu0 %v179
    %v276 = vpop.f32.mrf.mxu0
    %v277 = vadd.f32 %v139, %v276
    %v278 = vpop.f32.mrf.mxu0
    %v279 = vadd.f32 %v139, %v278
    %280 = vmatmul.bf16.gmra.mxu0 %v180
    %v281 = vpop.f32.mrf.mxu0
    %v282 = vadd.f32 %v139, %v281
    %v283 = vpop.f32.mrf.mxu0
    %v284 = vadd.f32 %v139, %v283
    %285 = vdwg.mxu0
    %v286 = vmax.f32 %v247, 0.0
    %v287 = vmax.f32 %v249, 0.0
    %v288 = vmax.f32 %v252, 0.0
    %v289 = vmax.f32 %v254, 0.0
    %v290 = vmax.f32 %v257, 0.0
    %v291 = vmax.f32 %v259, 0.0
    %v292 = vmax.f32 %v262, 0.0
    %v293 = vmax.f32 %v264, 0.0
    %v294 = vmax.f32 %v267, 0.0
    %v295 = vmax.f32 %v269, 0.0
    %v296 = vmax.f32 %v272, 0.0
    %v297 = vmax.f32 %v274, 0.0
    %v298 = vmax.f32 %v277, 0.0
    %v299 = vmax.f32 %v279, 0.0
    %v300 = vmax.f32 %v282, 0.0
    %v301 = vmax.f32 %v284, 0.0
    %v302 = vld [vmem:[#allocation2] sm:$0xf]
    %v303 = vld [vmem:[#allocation2 + $0x4] sm:$0xf]
    %v304 = vld [vmem:[#allocation2 + $0x8] sm:$0xf]
    %v305 = vld [vmem:[#allocation2 + $0xc] sm:$0xf]
    %v306 = vld [vmem:[#allocation2 + $0x10] sm:$0xf]
    %v307 = vld [vmem:[#allocation2 + $0x14] sm:$0xf]
    %v308 = vld [vmem:[#allocation2 + $0x18] sm:$0xf]
    %v309 = vld [vmem:[#allocation2 + $0x1c] sm:$0xf]
    %v310 = vld [vmem:[#allocation2 + $0x20] sm:$0xf]
    %v311 = vld [vmem:[#allocation2 + $0x24] sm:$0xf]
    %v312 = vld [vmem:[#allocation2 + $0x28] sm:$0xf]
    %v313 = vld [vmem:[#allocation2 + $0x2c] sm:$0xf]
    %v314 = vld [vmem:[#allocation2 + $0x30] sm:$0xf]
    %v315 = vld [vmem:[#allocation2 + $0x34] sm:$0xf]
    %v316 = vld [vmem:[#allocation2 + $0x38] sm:$0xf]
    %v317 = vld [vmem:[#allocation2 + $0x3c] sm:$0xf]
    %v318 = vpack.c.bf16 %v287, %v286
    %v319 = vpack.c.bf16 %v289, %v288
    %v320 = vpack.c.bf16 %v291, %v290
    %v321 = vpack.c.bf16 %v293, %v292
    %v322 = vpack.c.bf16 %v295, %v294
    %v323 = vpack.c.bf16 %v297, %v296
    %v324 = vpack.c.bf16 %v299, %v298
    %v325 = vpack.c.bf16 %v301, %v300
    %v326 = vld [vmem:[#allocation8] sm:$0xf]
    %v327 = vld [vmem:[#allocation8 + $0x4] sm:$0xf]
    %v328 = vld [vmem:[#allocation8 + $0x8] sm:$0xf]
    %v329 = vld [vmem:[#allocation8 + $0xc] sm:$0xf]
    %v330 = vld [vmem:[#allocation8 + $0x10] sm:$0xf]
    %v331 = vld [vmem:[#allocation8 + $0x14] sm:$0xf]
    %v332 = vld [vmem:[#allocation8 + $0x18] sm:$0xf]
    %v333 = vld [vmem:[#allocation8 + $0x1c] sm:$0xf]
    %v334 = vld [vmem:[#allocation8 + $0x20] sm:$0xf]
    %v335 = vld [vmem:[#allocation8 + $0x24] sm:$0xf]
    %v336 = vld [vmem:[#allocation8 + $0x28] sm:$0xf]
    %v337 = vld [vmem:[#allocation8 + $0x2c] sm:$0xf]
    %v338 = vld [vmem:[#allocation8 + $0x30] sm:$0xf]
    %v339 = vld [vmem:[#allocation8 + $0x34] sm:$0xf]
    %v340 = vld [vmem:[#allocation8 + $0x38] sm:$0xf]
    %v341 = vld [vmem:[#allocation8 + $0x3c] sm:$0xf]
    %v358 = vunpack.c.l.b16 %v326
    %v359 = vunpack.c.l.b16 %v327
    %v360 = vunpack.c.l.b16 %v328
    %v361 = vunpack.c.l.b16 %v329
    %v362 = vunpack.c.l.b16 %v330
    %v363 = vunpack.c.l.b16 %v331
    %v364 = vunpack.c.l.b16 %v332
    %v365 = vunpack.c.l.b16 %v333
    %v366 = vunpack.c.l.b16 %v334
    %v367 = vunpack.c.l.b16 %v335
    %v368 = vunpack.c.l.b16 %v336
    %v369 = vunpack.c.l.b16 %v337
    %v370 = vunpack.c.l.b16 %v338
    %v371 = vunpack.c.l.b16 %v339
    %v372 = vunpack.c.l.b16 %v340
    %v373 = vunpack.c.l.b16 %v341
    %v374 = vpack.c.b16 %v359, %v358
    %v375 = vpack.c.b16 %v361, %v360
    %v376 = vpack.c.b16 %v363, %v362
    %v377 = vpack.c.b16 %v365, %v364
    %v378 = vpack.c.b16 %v367, %v366
    %v379 = vpack.c.b16 %v369, %v368
    %v380 = vpack.c.b16 %v371, %v370
    %v381 = vpack.c.b16 %v373, %v372
    %390 = vmatpush.bf16.msra.mxu0 %v381
    %391 = vmatpush.bf16.msra.mxu0 %v380
    %392 = vmatpush.bf16.msra.mxu0 %v379
    %393 = vmatpush.bf16.msra.mxu0 %v378
    %394 = vmatpush.bf16.msra.mxu0 %v377
    %395 = vmatpush.bf16.msra.mxu0 %v376
    %396 = vmatpush.bf16.msra.mxu0 %v375
    %397 = vmatpush.bf16.msra.mxu0 %v374
    %398 = vmatmul.bf16.gmra.mxu0 %v318
    %v399 = vpop.f32.mrf.mxu0
    %v400 = vadd.f32 0.0, %v399
    %v401 = vpop.f32.mrf.mxu0
    %v402 = vadd.f32 0.0, %v401
    %403 = vmatmul.bf16.gmra.mxu0 %v319
    %v404 = vpop.f32.mrf.mxu0
    %v405 = vadd.f32 0.0, %v404
    %v406 = vpop.f32.mrf.mxu0
    %v407 = vadd.f32 0.0, %v406
    %408 = vmatmul.bf16.gmra.mxu0 %v320
    %v409 = vpop.f32.mrf.mxu0
    %v410 = vadd.f32 0.0, %v409
    %v411 = vpop.f32.mrf.mxu0
    %v412 = vadd.f32 0.0, %v411
    %413 = vmatmul.bf16.gmra.mxu0 %v321
    %v414 = vpop.f32.mrf.mxu0
    %v415 = vadd.f32 0.0, %v414
    %v416 = vpop.f32.mrf.mxu0
    %v417 = vadd.f32 0.0, %v416
    %418 = vmatmul.bf16.gmra.mxu0 %v322
    %v419 = vpop.f32.mrf.mxu0
    %v420 = vadd.f32 0.0, %v419
    %v421 = vpop.f32.mrf.mxu0
    %v422 = vadd.f32 0.0, %v421
    %423 = vmatmul.bf16.gmra.mxu0 %v323
    %v424 = vpop.f32.mrf.mxu0
    %v425 = vadd.f32 0.0, %v424
    %v426 = vpop.f32.mrf.mxu0
    %v427 = vadd.f32 0.0, %v426
    %428 = vmatmul.bf16.gmra.mxu0 %v324
    %v429 = vpop.f32.mrf.mxu0
    %v430 = vadd.f32 0.0, %v429
    %v431 = vpop.f32.mrf.mxu0
    %v432 = vadd.f32 0.0, %v431
    %433 = vmatmul.bf16.gmra.mxu0 %v325
    %v434 = vpop.f32.mrf.mxu0
    %v435 = vadd.f32 0.0, %v434
    %v436 = vpop.f32.mrf.mxu0
    %v437 = vadd.f32 0.0, %v436
    %438 = vdwg.mxu0
    %v439 = vpack.c.bf16 %v402, %v400
    %v440 = vpack.c.bf16 %v407, %v405
    %v441 = vpack.c.bf16 %v412, %v410
    %v442 = vpack.c.bf16 %v417, %v415
    %v443 = vpack.c.bf16 %v422, %v420
    %v444 = vpack.c.bf16 %v427, %v425
    %v445 = vpack.c.bf16 %v432, %v430
    %v446 = vpack.c.bf16 %v437, %v435
    %v463 = vunpack.c.l.b16 %v302
    %v464 = vunpack.c.l.b16 %v303
    %v465 = vunpack.c.l.b16 %v304
    %v466 = vunpack.c.l.b16 %v305
    %v467 = vunpack.c.l.b16 %v306
    %v468 = vunpack.c.l.b16 %v307
    %v469 = vunpack.c.l.b16 %v308
    %v470 = vunpack.c.l.b16 %v309
    %v471 = vunpack.c.l.b16 %v310
    %v472 = vunpack.c.l.b16 %v311
    %v473 = vunpack.c.l.b16 %v312
    %v474 = vunpack.c.l.b16 %v313
    %v475 = vunpack.c.l.b16 %v314
    %v476 = vunpack.c.l.b16 %v315
    %v477 = vunpack.c.l.b16 %v316
    %v478 = vunpack.c.l.b16 %v317
    %v479 = vpack.c.b16 %v464, %v463
    %v480 = vpack.c.b16 %v466, %v465
    %v481 = vpack.c.b16 %v468, %v467
    %v482 = vpack.c.b16 %v470, %v469
    %v483 = vpack.c.b16 %v472, %v471
    %v484 = vpack.c.b16 %v474, %v473
    %v485 = vpack.c.b16 %v476, %v475
    %v486 = vpack.c.b16 %v478, %v477
    %495 = vmatpush.bf16.msra.mxu0 %v446
    %496 = vmatpush.bf16.msra.mxu0 %v445
    %497 = vmatpush.bf16.msra.mxu0 %v444
    %498 = vmatpush.bf16.msra.mxu0 %v443
    %499 = vmatpush.bf16.msra.mxu0 %v442
    %500 = vmatpush.bf16.msra.mxu0 %v441
    %501 = vmatpush.bf16.msra.mxu0 %v440
    %502 = vmatpush.bf16.msra.mxu0 %v439
    %503 = vmatmul.bf16.gmra.mxu0 %v479
    %v504 = vpop.f32.mrf.mxu0
    %v505 = vadd.f32 0.0, %v504
    %v506 = vpop.f32.mrf.mxu0
    %v507 = vadd.f32 0.0, %v506
    %508 = vmatmul.bf16.gmra.mxu0 %v480
    %v509 = vpop.f32.mrf.mxu0
    %v510 = vadd.f32 0.0, %v509
    %v511 = vpop.f32.mrf.mxu0
    %v512 = vadd.f32 0.0, %v511
    %513 = vmatmul.bf16.gmra.mxu0 %v481
    %v514 = vpop.f32.mrf.mxu0
    %v515 = vadd.f32 0.0, %v514
    %v516 = vpop.f32.mrf.mxu0
    %v517 = vadd.f32 0.0, %v516
    %518 = vmatmul.bf16.gmra.mxu0 %v482
    %v519 = vpop.f32.mrf.mxu0
    %v520 = vadd.f32 0.0, %v519
    %v521 = vpop.f32.mrf.mxu0
    %v522 = vadd.f32 0.0, %v521
    %523 = vmatmul.bf16.gmra.mxu0 %v483
    %v524 = vpop.f32.mrf.mxu0
    %v525 = vadd.f32 0.0, %v524
    %v526 = vpop.f32.mrf.mxu0
    %v527 = vadd.f32 0.0, %v526
    %528 = vmatmul.bf16.gmra.mxu0 %v484
    %v529 = vpop.f32.mrf.mxu0
    %v530 = vadd.f32 0.0, %v529
    %v531 = vpop.f32.mrf.mxu0
    %v532 = vadd.f32 0.0, %v531
    %533 = vmatmul.bf16.gmra.mxu0 %v485
    %v534 = vpop.f32.mrf.mxu0
    %v535 = vadd.f32 0.0, %v534
    %v536 = vpop.f32.mrf.mxu0
    %v537 = vadd.f32 0.0, %v536
    %538 = vmatmul.bf16.gmra.mxu0 %v486
    %v539 = vpop.f32.mrf.mxu0
    %v540 = vadd.f32 0.0, %v539
    %v541 = vpop.f32.mrf.mxu0
    %v542 = vadd.f32 0.0, %v541
    %543 = vdwg.mxu0
    %v544 = vmax.f32 %v505, 0.0
    %v545 = vmax.f32 %v507, 0.0
    %v546 = vmax.f32 %v510, 0.0
    %v547 = vmax.f32 %v512, 0.0
    %v548 = vmax.f32 %v515, 0.0
    %v549 = vmax.f32 %v517, 0.0
    %v550 = vmax.f32 %v520, 0.0
    %v551 = vmax.f32 %v522, 0.0
    %v552 = vmax.f32 %v525, 0.0
    %v553 = vmax.f32 %v527, 0.0
    %v554 = vmax.f32 %v530, 0.0
    %v555 = vmax.f32 %v532, 0.0
    %v556 = vmax.f32 %v535, 0.0
    %v557 = vmax.f32 %v537, 0.0
    %v558 = vmax.f32 %v540, 0.0
    %v559 = vmax.f32 %v542, 0.0
    %v560 = vpack.c.bf16 %v545, %v544
    %v561 = vpack.c.bf16 %v547, %v546
    %v562 = vpack.c.bf16 %v549, %v548
    %v563 = vpack.c.bf16 %v551, %v550
    %v564 = vpack.c.bf16 %v553, %v552
    %v565 = vpack.c.bf16 %v555, %v554
    %v566 = vpack.c.bf16 %v557, %v556
    %v567 = vpack.c.bf16 %v559, %v558
    %s568 = scalar_lea.vmem [#allocation8], 64
    %v569 = vld [vmem:[%s568] sm:$0xf]
    %v570 = vld [vmem:[%s568 + $0x4] sm:$0xf]
    %v571 = vld [vmem:[%s568 + $0x8] sm:$0xf]
    %v572 = vld [vmem:[%s568 + $0xc] sm:$0xf]
    %v573 = vld [vmem:[%s568 + $0x10] sm:$0xf]
    %v574 = vld [vmem:[%s568 + $0x14] sm:$0xf]
    %v575 = vld [vmem:[%s568 + $0x18] sm:$0xf]
    %v576 = vld [vmem:[%s568 + $0x1c] sm:$0xf]
    %v577 = vld [vmem:[%s568 + $0x20] sm:$0xf]
    %v578 = vld [vmem:[%s568 + $0x24] sm:$0xf]
    %v579 = vld [vmem:[%s568 + $0x28] sm:$0xf]
    %v580 = vld [vmem:[%s568 + $0x2c] sm:$0xf]
    %v581 = vld [vmem:[%s568 + $0x30] sm:$0xf]
    %v582 = vld [vmem:[%s568 + $0x34] sm:$0xf]
    %v583 = vld [vmem:[%s568 + $0x38] sm:$0xf]
    %v584 = vld [vmem:[%s568 + $0x3c] sm:$0xf]
    %v601 = vunpack.c.l.b16 %v569
    %v602 = vunpack.c.l.b16 %v570
    %v603 = vunpack.c.l.b16 %v571
    %v604 = vunpack.c.l.b16 %v572
    %v605 = vunpack.c.l.b16 %v573
    %v606 = vunpack.c.l.b16 %v574
    %v607 = vunpack.c.l.b16 %v575
    %v608 = vunpack.c.l.b16 %v576
    %v609 = vunpack.c.l.b16 %v577
    %v610 = vunpack.c.l.b16 %v578
    %v611 = vunpack.c.l.b16 %v579
    %v612 = vunpack.c.l.b16 %v580
    %v613 = vunpack.c.l.b16 %v581
    %v614 = vunpack.c.l.b16 %v582
    %v615 = vunpack.c.l.b16 %v583
    %v616 = vunpack.c.l.b16 %v584
    %v617 = vpack.c.b16 %v602, %v601
    %v618 = vpack.c.b16 %v604, %v603
    %v619 = vpack.c.b16 %v606, %v605
    %v620 = vpack.c.b16 %v608, %v607
    %v621 = vpack.c.b16 %v610, %v609
    %v622 = vpack.c.b16 %v612, %v611
    %v623 = vpack.c.b16 %v614, %v613
    %v624 = vpack.c.b16 %v616, %v615
    %633 = vmatpush.bf16.msra.mxu0 %v624
    %634 = vmatpush.bf16.msra.mxu0 %v623
    %635 = vmatpush.bf16.msra.mxu0 %v622
    %636 = vmatpush.bf16.msra.mxu0 %v621
    %637 = vmatpush.bf16.msra.mxu0 %v620
    %638 = vmatpush.bf16.msra.mxu0 %v619
    %639 = vmatpush.bf16.msra.mxu0 %v618
    %640 = vmatpush.bf16.msra.mxu0 %v617
    %641 = vmatmul.bf16.gmra.mxu0 %v560
    %v642 = vpop.f32.mrf.mxu0
    %v643 = vadd.f32 0.0, %v642
    %v644 = vpop.f32.mrf.mxu0
    %v645 = vadd.f32 0.0, %v644
    %646 = vmatmul.bf16.gmra.mxu0 %v561
    %v647 = vpop.f32.mrf.mxu0
    %v648 = vadd.f32 0.0, %v647
    %v649 = vpop.f32.mrf.mxu0
    %v650 = vadd.f32 0.0, %v649
    %651 = vmatmul.bf16.gmra.mxu0 %v562
    %v652 = vpop.f32.mrf.mxu0
    %v653 = vadd.f32 0.0, %v652
    %v654 = vpop.f32.mrf.mxu0
    %v655 = vadd.f32 0.0, %v654
    %656 = vmatmul.bf16.gmra.mxu0 %v563
    %v657 = vpop.f32.mrf.mxu0
    %v658 = vadd.f32 0.0, %v657
    %v659 = vpop.f32.mrf.mxu0
    %v660 = vadd.f32 0.0, %v659
    %661 = vmatmul.bf16.gmra.mxu0 %v564
    %v662 = vpop.f32.mrf.mxu0
    %v663 = vadd.f32 0.0, %v662
    %v664 = vpop.f32.mrf.mxu0
    %v665 = vadd.f32 0.0, %v664
    %666 = vmatmul.bf16.gmra.mxu0 %v565
    %v667 = vpop.f32.mrf.mxu0
    %v668 = vadd.f32 0.0, %v667
    %v669 = vpop.f32.mrf.mxu0
    %v670 = vadd.f32 0.0, %v669
    %671 = vmatmul.bf16.gmra.mxu0 %v566
    %v672 = vpop.f32.mrf.mxu0
    %v673 = vadd.f32 0.0, %v672
    %v674 = vpop.f32.mrf.mxu0
    %v675 = vadd.f32 0.0, %v674
    %676 = vmatmul.bf16.gmra.mxu0 %v567
    %v677 = vpop.f32.mrf.mxu0
    %v678 = vadd.f32 0.0, %v677
    %v679 = vpop.f32.mrf.mxu0
    %v680 = vadd.f32 0.0, %v679
    %681 = vdwg.mxu0
    %v682 = vpack.c.bf16 %v645, %v643
    %v683 = vpack.c.bf16 %v650, %v648
    %v684 = vpack.c.bf16 %v655, %v653
    %v685 = vpack.c.bf16 %v660, %v658
    %v686 = vpack.c.bf16 %v665, %v663
    %v687 = vpack.c.bf16 %v670, %v668
    %v688 = vpack.c.bf16 %v675, %v673
    %v689 = vpack.c.bf16 %v680, %v678
    %690 = vmatpush.bf16.msra.mxu0 %v689
    %691 = vmatpush.bf16.msra.mxu0 %v688
    %692 = vmatpush.bf16.msra.mxu0 %v687
    %693 = vmatpush.bf16.msra.mxu0 %v686
    %694 = vmatpush.bf16.msra.mxu0 %v685
    %695 = vmatpush.bf16.msra.mxu0 %v684
    %696 = vmatpush.bf16.msra.mxu0 %v683
    %697 = vmatpush.bf16.msra.mxu0 %v682
    %698 = vmatmul.bf16.gmra.mxu0 %v479
    %v699 = vpop.f32.mrf.mxu0
    %v700 = vadd.f32 0.0, %v699
    %v701 = vpop.f32.mrf.mxu0
    %v702 = vadd.f32 0.0, %v701
    %703 = vmatmul.bf16.gmra.mxu0 %v480
    %v704 = vpop.f32.mrf.mxu0
    %v705 = vadd.f32 0.0, %v704
    %v706 = vpop.f32.mrf.mxu0
    %v707 = vadd.f32 0.0, %v706
    %708 = vmatmul.bf16.gmra.mxu0 %v481
    %v709 = vpop.f32.mrf.mxu0
    %v710 = vadd.f32 0.0, %v709
    %v711 = vpop.f32.mrf.mxu0
    %v712 = vadd.f32 0.0, %v711
    %713 = vmatmul.bf16.gmra.mxu0 %v482
    %v714 = vpop.f32.mrf.mxu0
    %v715 = vadd.f32 0.0, %v714
    %v716 = vpop.f32.mrf.mxu0
    %v717 = vadd.f32 0.0, %v716
    %718 = vmatmul.bf16.gmra.mxu0 %v483
    %v719 = vpop.f32.mrf.mxu0
    %v720 = vadd.f32 0.0, %v719
    %v721 = vpop.f32.mrf.mxu0
    %v722 = vadd.f32 0.0, %v721
    %723 = vmatmul.bf16.gmra.mxu0 %v484
    %v724 = vpop.f32.mrf.mxu0
    %v725 = vadd.f32 0.0, %v724
    %v726 = vpop.f32.mrf.mxu0
    %v727 = vadd.f32 0.0, %v726
    %728 = vmatmul.bf16.gmra.mxu0 %v485
    %v729 = vpop.f32.mrf.mxu0
    %v730 = vadd.f32 0.0, %v729
    %v731 = vpop.f32.mrf.mxu0
    %v732 = vadd.f32 0.0, %v731
    %733 = vmatmul.bf16.gmra.mxu0 %v486
    %v734 = vpop.f32.mrf.mxu0
    %v735 = vadd.f32 0.0, %v734
    %v736 = vpop.f32.mrf.mxu0
    %v737 = vadd.f32 0.0, %v736
    %738 = vdwg.mxu0
    %v739 = vmax.f32 %v700, 0.0
    %v740 = vmax.f32 %v702, 0.0
    %v741 = vmax.f32 %v705, 0.0
    %v742 = vmax.f32 %v707, 0.0
    %v743 = vmax.f32 %v710, 0.0
    %v744 = vmax.f32 %v712, 0.0
    %v745 = vmax.f32 %v715, 0.0
    %v746 = vmax.f32 %v717, 0.0
    %v747 = vmax.f32 %v720, 0.0
    %v748 = vmax.f32 %v722, 0.0
    %v749 = vmax.f32 %v725, 0.0
    %v750 = vmax.f32 %v727, 0.0
    %v751 = vmax.f32 %v730, 0.0
    %v752 = vmax.f32 %v732, 0.0
    %v753 = vmax.f32 %v735, 0.0
    %v754 = vmax.f32 %v737, 0.0
    %v755 = vpack.c.bf16 %v740, %v739
    %v756 = vpack.c.bf16 %v742, %v741
    %v757 = vpack.c.bf16 %v744, %v743
    %v758 = vpack.c.bf16 %v746, %v745
    %v759 = vpack.c.bf16 %v748, %v747
    %v760 = vpack.c.bf16 %v750, %v749
    %v761 = vpack.c.bf16 %v752, %v751
    %v762 = vpack.c.bf16 %v754, %v753
    %v763 = vld [vmem:[#allocation10] sm:$0xf]
    %v764 = vld [vmem:[#allocation10 + $0x4] sm:$0xf]
    %v765 = vld [vmem:[#allocation10 + $0x8] sm:$0xf]
    %v766 = vld [vmem:[#allocation10 + $0xc] sm:$0xf]
    %v767 = vld [vmem:[#allocation10 + $0x10] sm:$0xf]
    %v768 = vld [vmem:[#allocation10 + $0x14] sm:$0xf]
    %v769 = vld [vmem:[#allocation10 + $0x18] sm:$0xf]
    %v770 = vld [vmem:[#allocation10 + $0x1c] sm:$0xf]
    %v771 = vld [vmem:[#allocation10 + $0x20] sm:$0xf]
    %v772 = vld [vmem:[#allocation10 + $0x24] sm:$0xf]
    %v773 = vld [vmem:[#allocation10 + $0x28] sm:$0xf]
    %v774 = vld [vmem:[#allocation10 + $0x2c] sm:$0xf]
    %v775 = vld [vmem:[#allocation10 + $0x30] sm:$0xf]
    %v776 = vld [vmem:[#allocation10 + $0x34] sm:$0xf]
    %v777 = vld [vmem:[#allocation10 + $0x38] sm:$0xf]
    %v778 = vld [vmem:[#allocation10 + $0x3c] sm:$0xf]
    %v779 = vld [vmem:[%s6] sm:$0x1]
    %v781 = vperm.slane %v779, 0
    %v799 = vunpack.c.l.b16 %v763
    %v800 = vunpack.c.l.b16 %v764
    %v801 = vunpack.c.l.b16 %v765
    %v802 = vunpack.c.l.b16 %v766
    %v803 = vunpack.c.l.b16 %v767
    %v804 = vunpack.c.l.b16 %v768
    %v805 = vunpack.c.l.b16 %v769
    %v806 = vunpack.c.l.b16 %v770
    %v807 = vunpack.c.l.b16 %v771
    %v808 = vunpack.c.l.b16 %v772
    %v809 = vunpack.c.l.b16 %v773
    %v810 = vunpack.c.l.b16 %v774
    %v811 = vunpack.c.l.b16 %v775
    %v812 = vunpack.c.l.b16 %v776
    %v813 = vunpack.c.l.b16 %v777
    %v814 = vunpack.c.l.b16 %v778
    %v815 = vpack.c.b16 %v800, %v799
    %v816 = vpack.c.b16 %v802, %v801
    %v817 = vpack.c.b16 %v804, %v803
    %v818 = vpack.c.b16 %v806, %v805
    %v819 = vpack.c.b16 %v808, %v807
    %v820 = vpack.c.b16 %v810, %v809
    %v821 = vpack.c.b16 %v812, %v811
    %v822 = vpack.c.b16 %v814, %v813
    %831 = vmatpush.bf16.msra.mxu0 %v822
    %832 = vmatpush.bf16.msra.mxu0 %v821
    %833 = vmatpush.bf16.msra.mxu0 %v820
    %834 = vmatpush.bf16.msra.mxu0 %v819
    %835 = vmatpush.bf16.msra.mxu0 %v818
    %836 = vmatpush.bf16.msra.mxu0 %v817
    %837 = vmatpush.bf16.msra.mxu0 %v816
    %838 = vmatpush.bf16.msra.mxu0 %v815
    %839 = vmatmul.bf16.gmra.mxu0 %v755
    %v840 = vpop.f32.mrf.mxu0
    %v841 = vadd.f32 %v781, %v840
    %v842 = vpop.f32.mrf.mxu0
    %v843 = vadd.f32 %v781, %v842
    %844 = vmatmul.bf16.gmra.mxu0 %v756
    %v845 = vpop.f32.mrf.mxu0
    %v846 = vadd.f32 %v781, %v845
    %v847 = vpop.f32.mrf.mxu0
    %v848 = vadd.f32 %v781, %v847
    %849 = vmatmul.bf16.gmra.mxu0 %v757
    %v850 = vpop.f32.mrf.mxu0
    %v851 = vadd.f32 %v781, %v850
    %v852 = vpop.f32.mrf.mxu0
    %v853 = vadd.f32 %v781, %v852
    %854 = vmatmul.bf16.gmra.mxu0 %v758
    %v855 = vpop.f32.mrf.mxu0
    %v856 = vadd.f32 %v781, %v855
    %v857 = vpop.f32.mrf.mxu0
    %v858 = vadd.f32 %v781, %v857
    %859 = vmatmul.bf16.gmra.mxu0 %v759
    %v860 = vpop.f32.mrf.mxu0
    %v861 = vadd.f32 %v781, %v860
    %v862 = vpop.f32.mrf.mxu0
    %v863 = vadd.f32 %v781, %v862
    %864 = vmatmul.bf16.gmra.mxu0 %v760
    %v865 = vpop.f32.mrf.mxu0
    %v866 = vadd.f32 %v781, %v865
    %v867 = vpop.f32.mrf.mxu0
    %v868 = vadd.f32 %v781, %v867
    %869 = vmatmul.bf16.gmra.mxu0 %v761
    %v870 = vpop.f32.mrf.mxu0
    %v871 = vadd.f32 %v781, %v870
    %v872 = vpop.f32.mrf.mxu0
    %v873 = vadd.f32 %v781, %v872
    %874 = vmatmul.bf16.gmra.mxu0 %v762
    %v875 = vpop.f32.mrf.mxu0
    %v876 = vadd.f32 %v781, %v875
    %v877 = vpop.f32.mrf.mxu0
    %v878 = vadd.f32 %v781, %v877
    %879 = vdwg.mxu0
    %880 = vst [vmem:[#allocation11] sm:$0xff] %v841
    %881 = vst [vmem:[#allocation11 + $0x8] sm:$0xff] %v843
    %882 = vst [vmem:[#allocation11 + $0x10] sm:$0xff] %v846
    %883 = vst [vmem:[#allocation11 + $0x18] sm:$0xff] %v848
    %884 = vst [vmem:[#allocation11 + $0x20] sm:$0xff] %v851
    %885 = vst [vmem:[#allocation11 + $0x28] sm:$0xff] %v853
    %886 = vst [vmem:[#allocation11 + $0x30] sm:$0xff] %v856
    %887 = vst [vmem:[#allocation11 + $0x38] sm:$0xff] %v858
    %888 = vst [vmem:[#allocation11 + $0x40] sm:$0xff] %v861
    %889 = vst [vmem:[#allocation11 + $0x48] sm:$0xff] %v863
    %890 = vst [vmem:[#allocation11 + $0x50] sm:$0xff] %v866
    %891 = vst [vmem:[#allocation11 + $0x58] sm:$0xff] %v868
    %892 = vst [vmem:[#allocation11 + $0x60] sm:$0xff] %v871
    %893 = vst [vmem:[#allocation11 + $0x68] sm:$0xff] %v873
    %894 = vst [vmem:[#allocation11 + $0x70] sm:$0xff] %v876
    %895 = vst [vmem:[#allocation11 + $0x78] sm:$0xff] %v878
    // Predicated region
    $region50: #{tpu_custom_call.1} parent=1 // pred_check
      _
    $region51: #{tpu_custom_call.1} parent=1 // pred_check_branch
      %897 = sbr.rel (0) target = $region53
    $region52: #{tpu_custom_call.1} parent=1 // pred_region
      %899 = vsyncadd [#allocation4], 0
      %s900 = sshll.u32 [#allocation11], 4
      %s901 = int_to_ptr.vmem [resolvable:$true] %s900
      %s902 = sshll.u32 %s7, 4
      %s903 = int_to_ptr.hbm [resolvable:$true] %s902
      %908 = dma.vmem_to_hbm [thread:$0]  %s901, 2048, %s903, [#allocation4], 128, 128, 8
    $region53: #{tpu_custom_call.1} parent=1 // pred_fallthru
      _
    // Predicated region
    $region54: #{tpu_custom_call.1} parent=1 // pred_check
      _
    $region55: #{tpu_custom_call.1} parent=1 // pred_check_branch
      %910 = sbr.rel (0) target = $region57
    $region56: #{tpu_custom_call.1} parent=1 // pred_region
      %912 = dma.done [#allocation4], 2048
    $region57: #{tpu_custom_call.1} parent=1 // pred_fallthru
      _
    %913 = vsyncpa [#allocation3], 1
    %914 = vsyncpa [#allocation6], 1
    %915 = vsyncpa [#allocation9], 1
    %916 = vsyncpa [#allocation4], 1

</llo_original>
